<compile_context>
chip_gen: v7x
topology: tpu7x:2x2x1
jax: 0.10.0
libtpu: 0.0.40
codegen_flags: <defaults>
</compile_context>

<pallas_src>
import jax
import jax.numpy as jnp
from jax.experimental import pallas as pl
from jax.experimental.pallas import tpu as pltpu


# ---------------------------------------------------------------------------
# Fused kernel.
#   Grid: one axis over disease tiles (size td), marked "arbitrary" (reduction).
#   Per step: build kg for the td diseases of this tile, multiply-reduce against the
#   matching (D_out, td, CH) slab of the fc weight, accumulate logits.  Init at step 0,
#   bias + sigmoid at the last step.
# ---------------------------------------------------------------------------
def _fused_neuro_kernel(inp_ref,    # (S, 1)        symptom indicator
                        rule_ref,   # (td, R)       rule features for this disease tile
                        emb_ref,    # (S, E)        symptom embeddings
                        rel_ref,    # (NR, E)       relation embeddings
                        dise_ref,   # (td, E)       disease embeddings for this tile
                        w_ref,      # (D_out, td, CH) fc weight slab, CH = R + S*NR
                        b_ref,      # (D_out, 1)    fc bias
                        out_ref,    # (D_out, 1)    sigmoid(logits)
                        xh_ref,     # scratch (N, E) row-normalised masked (emb+rel)
                        acc_ref):   # scratch (D_out, 1) f32 logits accumulator
    k = pl.program_id(0)
    nk = pl.num_programs(0)

    S, E = emb_ref.shape
    NR = rel_ref.shape[0]
    N = S * NR

    @pl.when(k == 0)
    def _init():
        acc_ref[...] = jnp.zeros_like(acc_ref)
        # mask[s] = 1.0 iff symptom s is present (torch builds it row-wise from inputs)
        mask = (inp_ref[...] != 0.0).astype(jnp.float32)                 # (S, 1)
        x3 = (emb_ref[...][:, None, :] + rel_ref[...][None, :, :]) * mask[:, :, None]
        x = x3.reshape(N, E)                                             # (N, E)
        # rsqrt on the EUP instead of sqrt + divide; clamp matches torch eps behaviour
        inv_xn = jax.lax.rsqrt(
            jnp.maximum(jnp.sum(x * x, axis=1, keepdims=True), 1e-12))   # (N, 1)
        xh_ref[...] = x * inv_xn                                         # unit rows (or 0)

    # --- cosine similarity for this disease tile (MXU) ---
    d = dise_ref[...]                                                    # (td, E)
    inv_dn = jax.lax.rsqrt(
        jnp.maximum(jnp.sum(d * d, axis=1, keepdims=True), 1e-12))       # (td, 1)
    dh = d * inv_dn
    kg = jax.lax.dot_general(dh, xh_ref[...], (((1,), (1,)), ((), ())),
                             preferred_element_type=jnp.float32)         # (td, N)

    # --- partial fc: logits += sum_{d in tile, c} hidden[d, c] * W[o, d, c] ---
    hidden = jnp.concatenate([rule_ref[...], kg], axis=1)                # (td, CH)
    w = w_ref[...]                                                       # (D_out, td, CH)
    part = jnp.sum(w * hidden[None, :, :], axis=2)                       # (D_out, td)
    acc_ref[...] += jnp.sum(part, axis=1, keepdims=True)                 # (D_out, 1)

    @pl.when(k == nk - 1)
    def _finalize():
        z = acc_ref[...] + b_ref[...]
        out_ref[...] = 1.0 / (1.0 + jnp.exp(-z))


def _pick_disease_tile(D, CH, d_out, itemsize=4, tile_budget_bytes=8 << 20):
    """Largest disease-tile size that is a multiple of 8, divides D and keeps the
    streamed weight slab under a VMEM budget; falls back to D (single tile)."""
    cands = [t for t in range(8, D + 1, 8) if D % t == 0]
    for t in sorted(cands, reverse=True):
        if d_out * t * CH * itemsize <= tile_budget_bytes:
            return t
    return min(cands) if cands else D


def neuro_net_forward(inputs, rule_features, embeddings, rel_embeddings,
                      dise_embeddings, fc_weight, fc_bias, td=None):
    """Fused Pallas implementation of NeuroNet.forward.

    inputs          : (S,)   indicator vector over symptoms
    rule_features   : (D, R)
    embeddings      : (S, E) symptom embeddings
    rel_embeddings  : (NR, E)
    dise_embeddings : (D, E)
    fc_weight       : (D, D*(NR*S + R))   (torch nn.Linear layout)
    fc_bias         : (D,)
    returns         : (1, D) sigmoid probabilities
    """
    S, E = embeddings.shape
    NR = rel_embeddings.shape[0]
    D = dise_embeddings.shape[0]
    R = rule_features.shape[1]
    N = S * NR
    CH = R + N
    K = D * CH
    assert fc_weight.shape == (D, K), (fc_weight.shape, (D, K))

    if td is None:
        td = _pick_disease_tile(D, CH, D)
    assert D % td == 0 and (td % 8 == 0 or td == D), (D, td)
    grid = (D // td,)

    # Cheap wrapper-side views only (no repeat/tile/concat of activations).
    inputs_2d = inputs.reshape(S, 1).astype(jnp.float32)
    w3 = fc_weight.reshape(D, D, CH)          # row-major view: free / one-time
    bias_2d = fc_bias.reshape(D, 1)

    out_col = pl.pallas_call(
        _fused_neuro_kernel,
        out_shape=jax.ShapeDtypeStruct((D, 1), jnp.float32),
        grid_spec=pltpu.PrefetchScalarGridSpec(
            num_scalar_prefetch=0,
            grid=grid,
            in_specs=[
                pl.BlockSpec((S, 1), lambda k: (0, 0)),          # inputs (resident)
                pl.BlockSpec((td, R), lambda k: (k, 0)),         # rule features tile
                pl.BlockSpec((S, E), lambda k: (0, 0)),          # symptom embeddings
                pl.BlockSpec((NR, E), lambda k: (0, 0)),         # relation embeddings
                pl.BlockSpec((td, E), lambda k: (k, 0)),         # disease emb tile
                pl.BlockSpec((D, td, CH), lambda k: (0, k, 0)),  # fc weight slab
                pl.BlockSpec((D, 1), lambda k: (0, 0)),          # bias
            ],
            out_specs=pl.BlockSpec((D, 1), lambda k: (0, 0)),
            scratch_shapes=[
                pltpu.VMEM((N, E), jnp.float32),   # normalised masked (emb+rel)
                pltpu.VMEM((D, 1), jnp.float32),   # logits accumulator
            ],
        ),
        compiler_params=pltpu.CompilerParams(
            dimension_semantics=("arbitrary",)),   # reduction over disease tiles
    )(inputs_2d, rule_features, embeddings, rel_embeddings,
      dise_embeddings, w3, bias_2d)

    return out_col.reshape(1, D)   # (D,1) -> (1,D): same element order, free


# ---------------------------------------------------------------------------
# Pure-JAX reference mirroring the PyTorch forward exactly.
# ---------------------------------------------------------------------------
def neuro_net_reference(inputs, rule_features, embeddings, rel_embeddings,
                        dise_embeddings, fc_weight, fc_bias):
    S, E = embeddings.shape
    mask = (inputs != 0).astype(jnp.float32)[:, None, None]              # (S,1,1)
    x = (embeddings[:, None, :] + rel_embeddings[None, :, :]) * mask     # (S,NR,E)
    x = x.reshape(-1, E)                                                 # (N,E)
    dot = dise_embeddings @ x.T                                          # (D,N)
    xn = jnp.linalg.norm(x, axis=1)
    dn = jnp.linalg.norm(dise_embeddings, axis=1)
    kg = dot / jnp.maximum(dn[:, None] * xn[None, :], 1e-6)              # (D,N)
    hidden = jnp.concatenate([rule_features, kg], axis=1)                # (D,R+N)
    flat = hidden.reshape(1, -1)
    return jax.nn.sigmoid(flat @ fc_weight.T + fc_bias[None, :])


if __name__ == "__main__":
    # Small, deterministic problem sizes consistent with the module.
    S = 8      # symptom_num
    E = 32     # embedding_dim
    D = 16     # disease_num
    NR = 4     # number of relation embeddings
    R = 16     # rule_num
    N = S * NR
    K = D * (N + R)          # fc input dim = 16 * 48 = 768

    key = jax.random.PRNGKey(0)
    ks = jax.random.split(key, 5)
    embeddings = jax.random.normal(ks[0], (S, E), jnp.float32)
    rel_embeddings = jax.random.normal(ks[1], (NR, E), jnp.float32)
    dise_embeddings = jax.random.normal(ks[2], (D, E), jnp.float32)
    fc_weight = 0.05 * jax.random.normal(ks[3], (D, K), jnp.float32)
    fc_bias = 0.05 * jax.random.normal(ks[4], (D,), jnp.float32)
    rule_features = jax.random.uniform(jax.random.PRNGKey(1), (D, R), jnp.float32)
    # deterministic mixed present/absent symptoms
    inputs = jnp.array([1, 0, 1, 1, 0, 0, 1, 0], jnp.float32)

    fwd = jax.jit(neuro_net_forward, static_argnames=("td",))

    # td=8 -> 2 grid steps: exercises the tiled weight stream + accumulator path.
    out_tiled = jax.block_until_ready(
        fwd(inputs, rule_features, embeddings, rel_embeddings,
            dise_embeddings, fc_weight, fc_bias, td=8))
    # auto tile (single slab here): exercises the fallback path.
    out_auto = jax.block_until_ready(
        fwd(inputs, rule_features, embeddings, rel_embeddings,
            dise_embeddings, fc_weight, fc_bias))

    ref = neuro_net_reference(inputs, rule_features, embeddings, rel_embeddings,
                              dise_embeddings, fc_weight, fc_bias)

    assert out_tiled.shape == (1, D) and out_auto.shape == (1, D)
    assert jnp.allclose(out_tiled, ref, atol=1e-4, rtol=1e-4), (out_tiled, ref)
    assert jnp.allclose(out_auto, ref, atol=1e-4, rtol=1e-4), (out_auto, ref)
    print("KERNEL_OK")
</pallas_src>

<mosaic_0001>
module attributes {stable_mosaic.version = 11 : i64} {
  func.func @_fused_neuro_kernel(%arg0: i32, %arg1: memref<8x1xf32, #tpu.memory_space<vmem>>, %arg2: memref<8x16xf32, #tpu.memory_space<vmem>>, %arg3: memref<8x32xf32, #tpu.memory_space<vmem>>, %arg4: memref<4x32xf32, #tpu.memory_space<vmem>>, %arg5: memref<8x32xf32, #tpu.memory_space<vmem>>, %arg6: memref<16x8x48xf32, #tpu.memory_space<vmem>>, %arg7: memref<16x1xf32, #tpu.memory_space<vmem>>, %arg8: memref<16x1xf32, #tpu.memory_space<vmem>>, %arg9: memref<32x32xf32, #tpu.memory_space<vmem>>, %arg10: memref<16x1xf32, #tpu.memory_space<vmem>>) attributes {dimension_semantics = [#tpu.dimension_semantics<arbitrary>], iteration_bounds = array<i64: 2>, scalar_prefetch = 0 : i64, scratch_operands = 2 : i64, tpu.core_type = #tpu.core_type<tc>, window_params = [{pipeline_mode = #tpu.pipeline_mode<synchronous>, transform_indices = @transform_0, window_bounds = array<i64: 8, 1>}, {transform_indices = @transform_1, window_bounds = array<i64: 8, 16>}, {pipeline_mode = #tpu.pipeline_mode<synchronous>, transform_indices = @transform_2, window_bounds = array<i64: 8, 32>}, {pipeline_mode = #tpu.pipeline_mode<synchronous>, transform_indices = @transform_3, window_bounds = array<i64: 4, 32>}, {transform_indices = @transform_4, window_bounds = array<i64: 8, 32>}, {transform_indices = @transform_5, window_bounds = array<i64: 16, 8, 48>}, {pipeline_mode = #tpu.pipeline_mode<synchronous>, transform_indices = @transform_6, window_bounds = array<i64: 16, 1>}, {pipeline_mode = #tpu.pipeline_mode<synchronous>, transform_indices = @transform_7, window_bounds = array<i64: 16, 1>}]} {
    %c0_i32 = arith.constant 0 : i32
    %0 = arith.cmpi eq, %arg0, %c0_i32 : i32
    %1 = arith.extui %0 : i1 to i32
    %c0_i32_0 = arith.constant 0 : i32
    %2 = arith.cmpi ne, %1, %c0_i32_0 : i32
    scf.if %2 {
      %cst_18 = arith.constant 0.000000e+00 : f32
      %29 = vector.broadcast %cst_18 : f32 to vector<16x1xf32>
      %c0_19 = arith.constant 0 : index
      %c0_20 = arith.constant 0 : index
      %30 = vector.load %arg10[%c0_19, %c0_20] : memref<16x1xf32, #tpu.memory_space<vmem>>, vector<16x1xf32>
      tpu.vector_store %arg10[%c0_19, %c0_20], %29 {strides = array<i32>} : memref<16x1xf32, #tpu.memory_space<vmem>>, vector<16x1xf32>,
      %c0_21 = arith.constant 0 : index
      %c0_22 = arith.constant 0 : index
      %31 = vector.load %arg1[%c0_21, %c0_22] : memref<8x1xf32, #tpu.memory_space<vmem>>, vector<8x1xf32>
      %cst_23 = arith.constant 0.000000e+00 : f32
      %32 = vector.broadcast %cst_23 : f32 to vector<8x1xf32>
      %33 = arith.cmpf one, %31, %32 : vector<8x1xf32>
      %34 = arith.extui %33 : vector<8x1xi1> to vector<8x1xi32>
      %35 = arith.sitofp %34 : vector<8x1xi32> to vector<8x1xf32>
      %c0_24 = arith.constant 0 : index
      %c0_25 = arith.constant 0 : index
      %36 = vector.load %arg3[%c0_24, %c0_25] : memref<8x32xf32, #tpu.memory_space<vmem>>, vector<8x32xf32>
      %37 = vector.shape_cast %36 : vector<8x32xf32> to vector<8x1x32xf32>
      %c0_26 = arith.constant 0 : index
      %c0_27 = arith.constant 0 : index
      %38 = vector.load %arg4[%c0_26, %c0_27] : memref<4x32xf32, #tpu.memory_space<vmem>>, vector<4x32xf32>
      %39 = vector.shape_cast %38 : vector<4x32xf32> to vector<1x4x32xf32>
      %40 = vector.broadcast %37 : vector<8x1x32xf32> to vector<8x4x32xf32>
      %41 = vector.broadcast %39 : vector<1x4x32xf32> to vector<8x4x32xf32>
      %42 = arith.addf %40, %41 : vector<8x4x32xf32>
      %43 = vector.shape_cast %35 : vector<8x1xf32> to vector<8x1x1xf32>
      %44 = vector.broadcast %43 : vector<8x1x1xf32> to vector<8x4x32xf32>
      %45 = arith.mulf %42, %44 : vector<8x4x32xf32>
      %46 = vector.shape_cast %45 : vector<8x4x32xf32> to vector<32x32xf32>
      %47 = arith.mulf %46, %46 : vector<32x32xf32>
      %cst_28 = arith.constant dense<0.000000e+00> : vector<32xf32>
      %48 = vector.multi_reduction <add>, %47, %cst_28 [1] : vector<32x32xf32> to vector<32xf32>
      %49 = vector.shape_cast %48 : vector<32xf32> to vector<32x1xf32>
      %cst_29 = arith.constant 9.99999996E-13 : f32
      %50 = vector.broadcast %cst_29 : f32 to vector<32x1xf32>
      %51 = arith.maximumf %49, %50 : vector<32x1xf32>
      %52 = math.rsqrt %51 : vector<32x1xf32>
      %53 = vector.broadcast %52 : vector<32x1xf32> to vector<32x32xf32>
      %54 = arith.mulf %46, %53 : vector<32x32xf32>
      %c0_30 = arith.constant 0 : index
      %c0_31 = arith.constant 0 : index
      %55 = vector.load %arg9[%c0_30, %c0_31] : memref<32x32xf32, #tpu.memory_space<vmem>>, vector<32x32xf32>
      tpu.vector_store %arg9[%c0_30, %c0_31], %54 {strides = array<i32>} : memref<32x32xf32, #tpu.memory_space<vmem>>, vector<32x32xf32>,
    } else {
    }
    %c0 = arith.constant 0 : index
    %c0_1 = arith.constant 0 : index
    %3 = vector.load %arg5[%c0, %c0_1] : memref<8x32xf32, #tpu.memory_space<vmem>>, vector<8x32xf32>
    %4 = arith.mulf %3, %3 : vector<8x32xf32>
    %cst = arith.constant dense<0.000000e+00> : vector<8xf32>
    %5 = vector.multi_reduction <add>, %4, %cst [1] : vector<8x32xf32> to vector<8xf32>
    %6 = vector.shape_cast %5 : vector<8xf32> to vector<8x1xf32>
    %cst_2 = arith.constant 9.99999996E-13 : f32
    %7 = vector.broadcast %cst_2 : f32 to vector<8x1xf32>
    %8 = arith.maximumf %6, %7 : vector<8x1xf32>
    %9 = math.rsqrt %8 : vector<8x1xf32>
    %10 = vector.broadcast %9 : vector<8x1xf32> to vector<8x32xf32>
    %11 = arith.mulf %3, %10 : vector<8x32xf32>
    %c0_3 = arith.constant 0 : index
    %c0_4 = arith.constant 0 : index
    %12 = vector.load %arg9[%c0_3, %c0_4] : memref<32x32xf32, #tpu.memory_space<vmem>>, vector<32x32xf32>
    %cst_5 = arith.constant dense<0.000000e+00> : vector<8x32xf32>
    %13 = tpu.matmul %11, %12, %cst_5 {dimension_numbers = #tpu.dot_dimension_numbers<[1], [1], [0], [0], [0, 0, 1, 0], [], []>} : vector<8x32xf32>, vector<32x32xf32>, vector<8x32xf32> -> vector<8x32xf32>
    %c0_6 = arith.constant 0 : index
    %c0_7 = arith.constant 0 : index
    %14 = vector.load %arg2[%c0_6, %c0_7] : memref<8x16xf32, #tpu.memory_space<vmem>>, vector<8x16xf32>
    %15 = tpu.concatenate %14, %13 in 1 : vector<8x16xf32>, vector<8x32xf32> -> vector<8x48xf32>
    %c0_8 = arith.constant 0 : index
    %c0_9 = arith.constant 0 : index
    %c0_10 = arith.constant 0 : index
    %16 = vector.load %arg6[%c0_8, %c0_9, %c0_10] : memref<16x8x48xf32, #tpu.memory_space<vmem>>, vector<16x8x48xf32>
    %17 = vector.shape_cast %15 : vector<8x48xf32> to vector<1x8x48xf32>
    %18 = vector.broadcast %17 : vector<1x8x48xf32> to vector<16x8x48xf32>
    %19 = arith.mulf %16, %18 : vector<16x8x48xf32>
    %cst_11 = arith.constant dense<0.000000e+00> : vector<16x8xf32>
    %20 = vector.multi_reduction <add>, %19, %cst_11 [2] : vector<16x8x48xf32> to vector<16x8xf32>
    %c0_12 = arith.constant 0 : index
    %c0_13 = arith.constant 0 : index
    %21 = vector.load %arg10[%c0_12, %c0_13] : memref<16x1xf32, #tpu.memory_space<vmem>>, vector<16x1xf32>
    %cst_14 = arith.constant dense<0.000000e+00> : vector<16xf32>
    %22 = vector.multi_reduction <add>, %20, %cst_14 [1] : vector<16x8xf32> to vector<16xf32>
    %23 = vector.shape_cast %22 : vector<16xf32> to vector<16x1xf32>
    %24 = arith.addf %21, %23 : vector<16x1xf32>
    %c0_15 = arith.constant 0 : index
    %c0_16 = arith.constant 0 : index
    %25 = vector.load %arg10[%c0_15, %c0_16] : memref<16x1xf32, #tpu.memory_space<vmem>>, vector<16x1xf32>
    tpu.vector_store %arg10[%c0_15, %c0_16], %24 {strides = array<i32>} : memref<16x1xf32, #tpu.memory_space<vmem>>, vector<16x1xf32>,
    %c1_i32 = arith.constant 1 : i32
    %26 = arith.cmpi eq, %arg0, %c1_i32 : i32
    %27 = arith.extui %26 : i1 to i32
    %c0_i32_17 = arith.constant 0 : i32
    %28 = arith.cmpi ne, %27, %c0_i32_17 : i32
    scf.if %28 {
      %c0_18 = arith.constant 0 : index
      %c0_19 = arith.constant 0 : index
      %29 = vector.load %arg10[%c0_18, %c0_19] : memref<16x1xf32, #tpu.memory_space<vmem>>, vector<16x1xf32>
      %c0_20 = arith.constant 0 : index
      %c0_21 = arith.constant 0 : index
      %30 = vector.load %arg7[%c0_20, %c0_21] : memref<16x1xf32, #tpu.memory_space<vmem>>, vector<16x1xf32>
      %31 = arith.addf %29, %30 : vector<16x1xf32>
      %cst_22 = arith.constant 0.000000e+00 : f32
      %32 = vector.broadcast %cst_22 : f32 to vector<16x1xf32>
      %33 = arith.subf %32, %31 : vector<16x1xf32>
      %34 = math.exp %33 : vector<16x1xf32>
      %cst_23 = arith.constant 1.000000e+00 : f32
      %35 = vector.broadcast %cst_23 : f32 to vector<16x1xf32>
      %36 = arith.addf %35, %34 : vector<16x1xf32>
      %cst_24 = arith.constant 1.000000e+00 : f32
      %37 = vector.broadcast %cst_24 : f32 to vector<16x1xf32>
      %38 = arith.divf %37, %36 : vector<16x1xf32>
      %c0_25 = arith.constant 0 : index
      %c0_26 = arith.constant 0 : index
      %39 = vector.load %arg8[%c0_25, %c0_26] : memref<16x1xf32, #tpu.memory_space<vmem>>, vector<16x1xf32>
      tpu.vector_store %arg8[%c0_25, %c0_26], %38 {strides = array<i32>} : memref<16x1xf32, #tpu.memory_space<vmem>>, vector<16x1xf32>,
    } else {
    }
    return
  }
  func.func @transform_0(%arg0: i32) -> (i32, i32) {
    %c0_i32 = arith.constant 0 : i32
    %c0_i32_0 = arith.constant 0 : i32
    %c0_i32_1 = arith.constant 0 : i32
    return %c0_i32, %c0_i32_0 : i32, i32
  }
  func.func @transform_1(%arg0: i32) -> (i32, i32) {
    %c0_i32 = arith.constant 0 : i32
    %c0_i32_0 = arith.constant 0 : i32
    return %arg0, %c0_i32 : i32, i32
  }
  func.func @transform_2(%arg0: i32) -> (i32, i32) {
    %c0_i32 = arith.constant 0 : i32
    %c0_i32_0 = arith.constant 0 : i32
    %c0_i32_1 = arith.constant 0 : i32
    return %c0_i32, %c0_i32_0 : i32, i32
  }
  func.func @transform_3(%arg0: i32) -> (i32, i32) {
    %c0_i32 = arith.constant 0 : i32
    %c0_i32_0 = arith.constant 0 : i32
    %c0_i32_1 = arith.constant 0 : i32
    return %c0_i32, %c0_i32_0 : i32, i32
  }
  func.func @transform_4(%arg0: i32) -> (i32, i32) {
    %c0_i32 = arith.constant 0 : i32
    %c0_i32_0 = arith.constant 0 : i32
    return %arg0, %c0_i32 : i32, i32
  }
  func.func @transform_5(%arg0: i32) -> (i32, i32, i32) {
    %c0_i32 = arith.constant 0 : i32
    %c0_i32_0 = arith.constant 0 : i32
    %c0_i32_1 = arith.constant 0 : i32
    return %c0_i32, %arg0, %c0_i32_0 : i32, i32, i32
  }
  func.func @transform_6(%arg0: i32) -> (i32, i32) {
    %c0_i32 = arith.constant 0 : i32
    %c0_i32_0 = arith.constant 0 : i32
    %c0_i32_1 = arith.constant 0 : i32
    return %c0_i32, %c0_i32_0 : i32, i32
  }
  func.func @transform_7(%arg0: i32) -> (i32, i32) {
    %c0_i32 = arith.constant 0 : i32
    %c0_i32_0 = arith.constant 0 : i32
    %c0_i32_1 = arith.constant 0 : i32
    return %c0_i32, %c0_i32_0 : i32, i32
  }
}

</mosaic_0001>

<llo_original>
// kernel: neuro_net_forward.1
$region0: #{neuro_net_forward.1}
  #allocation0 [shape = 'u32[]', space=smem, size = 0x4, offset = 0x4, fixed_abs, tag = 'smem constant byte address 0x4 - core index']
  #allocation1 [shape = 'u32[144,128]{1,0:T(1,128)}', space=vmem, size = 0x12000, scoped, tag = 'internal scratch']
  #allocation2 [shape = 'f32[32,32]{1,0:T(8,128)}', space=vmem, size = 0x4000, scoped, tag = 'scratch operand']
  #allocation3 [shape = 'f32[16,1]{1,0:T(8,128)}', space=vmem, size = 0x2000, scoped, tag = 'scratch operand']
  %s0 = inlined_call_operand.vmem [shape: f32[8,1], index: 0, kind: input, shape index: {}]
  %s1 = inlined_call_operand.vmem [shape: f32[16,16], index: 1, kind: input, shape index: {}]
  %s2 = inlined_call_operand.vmem [shape: f32[8,32], index: 2, kind: input, shape index: {}]
  %s3 = inlined_call_operand.vmem [shape: f32[4,32], index: 3, kind: input, shape index: {}]
  %s4 = inlined_call_operand.vmem [shape: f32[16,32], index: 4, kind: input, shape index: {}]
  %s5 = inlined_call_operand.vmem [shape: f32[16,16,48], index: 5, kind: input, shape index: {}]
  %s6 = inlined_call_operand.vmem [shape: f32[16,1], index: 6, kind: input, shape index: {}]
  %s7 = inlined_call_operand.vmem [shape: f32[16,1], index: 7, kind: output, shape index: {}]
  %s8 = sld [smem:[#allocation0]]
  $region107: #{neuro_net_forward.1} parent=0
    _
  %s10 = ssub.s32 1, %s8
  %s11 = scalar_select 0, %s10, %s8
  $region1: #{neuro_net_forward.1} parent=0
    #allocation4 [shape = 'u8[131072]{0}', space=vmem, size = 0x20000, scoped, tag = 'input window, operand 5']
    loop: start=0, step=1, limit=4
    $region2: #{neuro_net_forward.1} parent=1 // loop_pre_header
      _
    $region3: #{neuro_net_forward.1} parent=1 // loop_header
      %s13 = sphi 0, %s17
      %p14 = scmp.ge.s32.totalorder %s13, 4
      %s21 = sphi 0, %s21
      %s23 = sphi 0, %s21
      %s24 = sphi 0, %s23
      %s38 = sphi 0, %s24
      %s44 = sphi 0, %s46
      %s47 = sphi 0, %s44
      %s48 = sphi 0, %s47
      %s64 = sphi 0, %s48
      %s68 = sphi 0, %s68
      %s70 = sphi 0, %s68
      %s71 = sphi 0, %s70
      %s85 = sphi 0, %s71
      %s89 = sphi 0, %s89
      %s91 = sphi 0, %s89
      %s92 = sphi 0, %s91
      %s106 = sphi 0, %s92
      %s112 = sphi 0, %s114
      %s115 = sphi 0, %s112
      %s116 = sphi 0, %s115
      %s132 = sphi 0, %s116
      %s138 = sphi 0, %s140
      %s141 = sphi 0, %s138
      %s142 = sphi 0, %s141
      %s158 = sphi 0, %s142
      %s162 = sphi 0, %s162
      %s164 = sphi 0, %s162
      %s165 = sphi 0, %s164
      %s179 = sphi 0, %s165
      %s183 = sphi 0, %s183
      %s185 = sphi 0, %s183
      %s186 = sphi 0, %s185
      %s200 = sphi 0, %s186
    $region4: #{neuro_net_forward.1} parent=1 // loop_header_branch
      %16 = sbr.rel (%p14) target = $region8
    $region5: #{neuro_net_forward.1} parent=1 // loop_body
      %s18 = ssub.s32 %s13, 1
      %s19 = ssub.s32 %s13, 2
      %s20 = sadd.s32 %s13, 1
      %s22 = sadd.s32 %s21, 1
      %p25 = scmp.eq.s32.totalorder %s13, 1
      %p26 = scmp.ne.s32.totalorder %s21, %s23
      %p27 = scmp.eq.s32.totalorder %s13, 0
      %p28 = por %p26, %p27
      %p29 = scmp.ne.s32.totalorder %s21, %s23
      %p30 = scmp.eq.s32.totalorder %s18, 1
      %p31 = por %p29, %p30
      %p32 = scmp.ne.s32.totalorder %s23, %s24
      %p33 = scmp.eq.s32.totalorder %s18, 0
      %p34 = por %p32, %p33
      %p35 = scmp.ne.s32.totalorder %s23, %s24
      %p36 = scmp.eq.s32.totalorder %s19, 1
      %p37 = por %p35, %p36
      %p39 = scmp.ne.s32.totalorder %s24, %s38
      %p40 = scmp.eq.s32.totalorder %s19, 0
      %p41 = por %p39, %p40
      %s42 = ssub.s32 %s13, %s20
      %p43 = scmp.eq.s32.totalorder %s42, 0
      %s45 = sadd.s32 %s44, 1
      %s46 = scalar_select %p43, %s44, %s45
      %p49 = pneg %p43
      %p50 = scmp.eq.s32.totalorder %s13, 1
      %p51 = por %p49, %p50
      %p52 = scmp.ne.s32.totalorder %s44, %s47
      %p53 = scmp.eq.s32.totalorder %s13, 0
      %p54 = por %p52, %p53
      %p55 = scmp.ne.s32.totalorder %s44, %s47
      %p56 = scmp.eq.s32.totalorder %s18, 1
      %p57 = por %p55, %p56
      %p58 = scmp.ne.s32.totalorder %s47, %s48
      %p59 = scmp.eq.s32.totalorder %s18, 0
      %p60 = por %p58, %p59
      %p61 = scmp.ne.s32.totalorder %s47, %s48
      %p62 = scmp.eq.s32.totalorder %s19, 1
      %p63 = por %p61, %p62
      %p65 = scmp.ne.s32.totalorder %s48, %s64
      %p66 = scmp.eq.s32.totalorder %s19, 0
      %p67 = por %p65, %p66
      %s69 = sadd.s32 %s68, 1
      %p72 = scmp.eq.s32.totalorder %s13, 1
      %p73 = scmp.ne.s32.totalorder %s68, %s70
      %p74 = scmp.eq.s32.totalorder %s13, 0
      %p75 = por %p73, %p74
      %p76 = scmp.ne.s32.totalorder %s68, %s70
      %p77 = scmp.eq.s32.totalorder %s18, 1
      %p78 = por %p76, %p77
      %p79 = scmp.ne.s32.totalorder %s70, %s71
      %p80 = scmp.eq.s32.totalorder %s18, 0
      %p81 = por %p79, %p80
      %p82 = scmp.ne.s32.totalorder %s70, %s71
      %p83 = scmp.eq.s32.totalorder %s19, 1
      %p84 = por %p82, %p83
      %p86 = scmp.ne.s32.totalorder %s71, %s85
      %p87 = scmp.eq.s32.totalorder %s19, 0
      %p88 = por %p86, %p87
      %s90 = sadd.s32 %s89, 1
      %p93 = scmp.eq.s32.totalorder %s13, 1
      %p94 = scmp.ne.s32.totalorder %s89, %s91
      %p95 = scmp.eq.s32.totalorder %s13, 0
      %p96 = por %p94, %p95
      %p97 = scmp.ne.s32.totalorder %s89, %s91
      %p98 = scmp.eq.s32.totalorder %s18, 1
      %p99 = por %p97, %p98
      %p100 = scmp.ne.s32.totalorder %s91, %s92
      %p101 = scmp.eq.s32.totalorder %s18, 0
      %p102 = por %p100, %p101
      %p103 = scmp.ne.s32.totalorder %s91, %s92
      %p104 = scmp.eq.s32.totalorder %s19, 1
      %p105 = por %p103, %p104
      %p107 = scmp.ne.s32.totalorder %s92, %s106
      %p108 = scmp.eq.s32.totalorder %s19, 0
      %p109 = por %p107, %p108
      %s110 = ssub.s32 %s13, %s20
      %p111 = scmp.eq.s32.totalorder %s110, 0
      %s113 = sadd.s32 %s112, 1
      %s114 = scalar_select %p111, %s112, %s113
      %p117 = pneg %p111
      %p118 = scmp.eq.s32.totalorder %s13, 1
      %p119 = por %p117, %p118
      %p120 = scmp.ne.s32.totalorder %s112, %s115
      %p121 = scmp.eq.s32.totalorder %s13, 0
      %p122 = por %p120, %p121
      %p123 = scmp.ne.s32.totalorder %s112, %s115
      %p124 = scmp.eq.s32.totalorder %s18, 1
      %p125 = por %p123, %p124
      %p126 = scmp.ne.s32.totalorder %s115, %s116
      %p127 = scmp.eq.s32.totalorder %s18, 0
      %p128 = por %p126, %p127
      %p129 = scmp.ne.s32.totalorder %s115, %s116
      %p130 = scmp.eq.s32.totalorder %s19, 1
      %p131 = por %p129, %p130
      %p133 = scmp.ne.s32.totalorder %s116, %s132
      %p134 = scmp.eq.s32.totalorder %s19, 0
      %p135 = por %p133, %p134
      %s136 = ssub.s32 %s13, %s20
      %p137 = scmp.eq.s32.totalorder %s136, 0
      %s139 = sadd.s32 %s138, 1
      %s140 = scalar_select %p137, %s138, %s139
      %p143 = pneg %p137
      %p144 = scmp.eq.s32.totalorder %s13, 1
      %p145 = por %p143, %p144
      %p146 = scmp.ne.s32.totalorder %s138, %s141
      %p147 = scmp.eq.s32.totalorder %s13, 0
      %p148 = por %p146, %p147
      %p149 = scmp.ne.s32.totalorder %s138, %s141
      %p150 = scmp.eq.s32.totalorder %s18, 1
      %p151 = por %p149, %p150
      %p152 = scmp.ne.s32.totalorder %s141, %s142
      %p153 = scmp.eq.s32.totalorder %s18, 0
      %p154 = por %p152, %p153
      %p155 = scmp.ne.s32.totalorder %s141, %s142
      %p156 = scmp.eq.s32.totalorder %s19, 1
      %p157 = por %p155, %p156
      %p159 = scmp.ne.s32.totalorder %s142, %s158
      %p160 = scmp.eq.s32.totalorder %s19, 0
      %p161 = por %p159, %p160
      %s163 = sadd.s32 %s162, 1
      %p166 = scmp.eq.s32.totalorder %s13, 1
      %p167 = scmp.ne.s32.totalorder %s162, %s164
      %p168 = scmp.eq.s32.totalorder %s13, 0
      %p169 = por %p167, %p168
      %p170 = scmp.ne.s32.totalorder %s162, %s164
      %p171 = scmp.eq.s32.totalorder %s18, 1
      %p172 = por %p170, %p171
      %p173 = scmp.ne.s32.totalorder %s164, %s165
      %p174 = scmp.eq.s32.totalorder %s18, 0
      %p175 = por %p173, %p174
      %p176 = scmp.ne.s32.totalorder %s164, %s165
      %p177 = scmp.eq.s32.totalorder %s19, 1
      %p178 = por %p176, %p177
      %p180 = scmp.ne.s32.totalorder %s165, %s179
      %p181 = scmp.eq.s32.totalorder %s19, 0
      %p182 = por %p180, %p181
      %s184 = sadd.s32 %s183, 1
      %p187 = scmp.eq.s32.totalorder %s13, 1
      %p188 = scmp.ne.s32.totalorder %s183, %s185
      %p189 = scmp.eq.s32.totalorder %s13, 0
      %p190 = por %p188, %p189
      %p191 = scmp.ne.s32.totalorder %s183, %s185
      %p192 = scmp.eq.s32.totalorder %s18, 1
      %p193 = por %p191, %p192
      %p194 = scmp.ne.s32.totalorder %s185, %s186
      %p195 = scmp.eq.s32.totalorder %s18, 0
      %p196 = por %p194, %p195
      %p197 = scmp.ne.s32.totalorder %s185, %s186
      %p198 = scmp.eq.s32.totalorder %s19, 1
      %p199 = por %p197, %p198
      %p201 = scmp.ne.s32.totalorder %s186, %s200
      %p202 = scmp.eq.s32.totalorder %s19, 0
      %p203 = por %p201, %p202
      %p204 = scmp.le.s32.totalorder 1, %s13
      %p205 = scmp.lt.s32.totalorder %s13, 3
      %p206 = pnand %p204, %p205
      %p207 = pneg %p206
      // Predicated region
      $region9: #{neuro_net_forward.1} parent=5 // pred_check
        _
      $region10: #{neuro_net_forward.1} parent=5 // pred_check_branch
        %209 = sbr.rel (%p206) target = $region12
      $region11: #{neuro_net_forward.1} parent=5 // pred_region
        %s210 = ssub.s32 %s13, 1
        // Predicated region
        $region13: #{neuro_net_forward.1} parent=11 // pred_check
          %p211 = pneg %p34
        $region14: #{neuro_net_forward.1} parent=11 // pred_check_branch
          %213 = sbr.rel (%p211) target = $region16
        $region15: #{neuro_net_forward.1} parent=11 // pred_region
          _
        $region16: #{neuro_net_forward.1} parent=11 // pred_fallthru
          _
        // Predicated region
        $region17: #{neuro_net_forward.1} parent=11 // pred_check
          %p214 = pneg %p81
        $region18: #{neuro_net_forward.1} parent=11 // pred_check_branch
          %216 = sbr.rel (%p214) target = $region20
        $region19: #{neuro_net_forward.1} parent=11 // pred_region
          _
        $region20: #{neuro_net_forward.1} parent=11 // pred_fallthru
          _
        // Predicated region
        $region21: #{neuro_net_forward.1} parent=11 // pred_check
          %p217 = pneg %p102
        $region22: #{neuro_net_forward.1} parent=11 // pred_check_branch
          %219 = sbr.rel (%p217) target = $region24
        $region23: #{neuro_net_forward.1} parent=11 // pred_region
          _
        $region24: #{neuro_net_forward.1} parent=11 // pred_fallthru
          _
        // Predicated region
        $region25: #{neuro_net_forward.1} parent=11 // pred_check
          %p220 = pneg %p175
        $region26: #{neuro_net_forward.1} parent=11 // pred_check_branch
          %222 = sbr.rel (%p220) target = $region28
        $region27: #{neuro_net_forward.1} parent=11 // pred_region
          _
        $region28: #{neuro_net_forward.1} parent=11 // pred_fallthru
          _
      $region12: #{neuro_net_forward.1} parent=5 // pred_fallthru
        _
      %p223 = scmp.lt.s32.totalorder %s13, 2
      // Predicated region
      $region29: #{neuro_net_forward.1} parent=5 // pred_check
        %p224 = pneg %p223
      $region30: #{neuro_net_forward.1} parent=5 // pred_check_branch
        %226 = sbr.rel (%p224) target = $region32
      $region31: #{neuro_net_forward.1} parent=5 // pred_region
        // Predicated region
        $region33: #{neuro_net_forward.1} parent=31 // pred_check
          %p227 = pneg %p54
        $region34: #{neuro_net_forward.1} parent=31 // pred_check_branch
          %229 = sbr.rel (%p227) target = $region36
        $region35: #{neuro_net_forward.1} parent=31 // pred_region
          %p230 = scmp.lt.s32.totalorder %s13, 1
          %s231 = scalar_select %p230, %s13, 1
          %s232 = smul.addr %s231, 8
          %s233 = scalar_lea.vmem %s1, %s232
        $region36: #{neuro_net_forward.1} parent=31 // pred_fallthru
          _
        // Predicated region
        $region37: #{neuro_net_forward.1} parent=31 // pred_check
          %p234 = pneg %p122
        $region38: #{neuro_net_forward.1} parent=31 // pred_check_branch
          %236 = sbr.rel (%p234) target = $region40
        $region39: #{neuro_net_forward.1} parent=31 // pred_region
          %p237 = scmp.lt.s32.totalorder %s13, 1
          %s238 = scalar_select %p237, %s13, 1
          %s239 = smul.addr %s238, 8
          %s240 = scalar_lea.vmem %s4, %s239
        $region40: #{neuro_net_forward.1} parent=31 // pred_fallthru
          _
        // Predicated region
        $region41: #{neuro_net_forward.1} parent=31 // pred_check
          %p241 = pneg %p148
        $region42: #{neuro_net_forward.1} parent=31 // pred_check_branch
          %243 = sbr.rel (%p241) target = $region44
        $region43: #{neuro_net_forward.1} parent=31 // pred_region
          %s244 = sand.u32 %s138, 1
          %s245 = sand.u32 %s138, 1
          %s246 = smul.addr %s245, 128
          %s247 = scalar_lea.vmem [#allocation4], %s246
          %s248 = smul.addr %s13, 8
          %s249 = scalar_lea.vmem %s5, %s248
          // Predicated region
          $region45: #{neuro_net_forward.1} parent=43 // pred_check
            _
          $region46: #{neuro_net_forward.1} parent=43 // pred_check_branch
            %251 = sbr.rel (0) target = $region48
          $region47: #{neuro_net_forward.1} parent=43 // pred_region
            // Predicated region
            $region49: #{neuro_net_forward.1} parent=47 // pred_check
              _
            $region50: #{neuro_net_forward.1} parent=47 // pred_check_branch
              %253 = sbr.rel (0) target = $region52
            $region51: #{neuro_net_forward.1} parent=47 // pred_region
              // Predicated region
              $region64: #{neuro_net_forward.1} parent=51 // pred_check
                _
              $region65: #{neuro_net_forward.1} parent=51 // pred_check_branch
                %298 = sbr.rel (0) target = $region67
              $region66: #{neuro_net_forward.1} parent=51 // pred_region
                loop: start=0, step=1, limit=1
                $region68: #{neuro_net_forward.1} parent=66 // loop_pre_header
                  _
                $region69: #{neuro_net_forward.1} parent=66 // loop_header
                  %s300 = sphi 0, %s304
                  %p301 = scmp.ge.s32.totalorder %s300, 1
                  %s305 = sphi %s249, %s249
                  %s306 = sphi %s247, %s247
                $region70: #{neuro_net_forward.1} parent=66 // loop_header_branch
                  %303 = sbr.rel (%p301) target = $region74
                $region71: #{neuro_net_forward.1} parent=66 // loop_body
                  %v307 = vld [vmem:[%s305] sm:$0xff]
                  %308 = vst [vmem:[%s306] sm:$0xff] %v307
                  %v309 = vld [vmem:[%s305 + $0x10] sm:$0xff]
                  %310 = vst [vmem:[%s306 + $0x8] sm:$0xff] %v309
                  %v311 = vld [vmem:[%s305 + $0x20] sm:$0xff]
                  %312 = vst [vmem:[%s306 + $0x10] sm:$0xff] %v311
                  %v313 = vld [vmem:[%s305 + $0x30] sm:$0xff]
                  %314 = vst [vmem:[%s306 + $0x18] sm:$0xff] %v313
                  %v315 = vld [vmem:[%s305 + $0x40] sm:$0xff]
                  %316 = vst [vmem:[%s306 + $0x20] sm:$0xff] %v315
                  %v317 = vld [vmem:[%s305 + $0x50] sm:$0xff]
                  %318 = vst [vmem:[%s306 + $0x28] sm:$0xff] %v317
                  %v319 = vld [vmem:[%s305 + $0x60] sm:$0xff]
                  %320 = vst [vmem:[%s306 + $0x30] sm:$0xff] %v319
                  %v321 = vld [vmem:[%s305 + $0x70] sm:$0xff]
                  %322 = vst [vmem:[%s306 + $0x38] sm:$0xff] %v321
                  %v323 = vld [vmem:[%s305 + $0x80] sm:$0xff]
                  %324 = vst [vmem:[%s306 + $0x40] sm:$0xff] %v323
                  %v325 = vld [vmem:[%s305 + $0x90] sm:$0xff]
                  %326 = vst [vmem:[%s306 + $0x48] sm:$0xff] %v325
                  %v327 = vld [vmem:[%s305 + $0xa0] sm:$0xff]
                  %328 = vst [vmem:[%s306 + $0x50] sm:$0xff] %v327
                  %v329 = vld [vmem:[%s305 + $0xb0] sm:$0xff]
                  %330 = vst [vmem:[%s306 + $0x58] sm:$0xff] %v329
                  %v331 = vld [vmem:[%s305 + $0xc0] sm:$0xff]
                  %332 = vst [vmem:[%s306 + $0x60] sm:$0xff] %v331
                  %v333 = vld [vmem:[%s305 + $0xd0] sm:$0xff]
                  %334 = vst [vmem:[%s306 + $0x68] sm:$0xff] %v333
                  %v335 = vld [vmem:[%s305 + $0xe0] sm:$0xff]
                  %336 = vst [vmem:[%s306 + $0x70] sm:$0xff] %v335
                  %v337 = vld [vmem:[%s305 + $0xf0] sm:$0xff]
                  %338 = vst [vmem:[%s306 + $0x78] sm:$0xff] %v337
                $region72: #{neuro_net_forward.1} parent=66 // loop_footer
                  %s304 = sadd.s32 1, %s300
                $region73: #{neuro_net_forward.1} parent=66 // loop_footer_branch
                  %299 = sbr.rel target = $region69
                $region74: #{neuro_net_forward.1} parent=66 // loop_exit
                  _
              $region67: #{neuro_net_forward.1} parent=51 // pred_fallthru
                _
              // Predicated region
              $region75: #{neuro_net_forward.1} parent=51 // pred_check
                _
              $region76: #{neuro_net_forward.1} parent=51 // pred_check_branch
                %340 = sbr.rel target = $region78
              $region77: #{neuro_net_forward.1} parent=51 // pred_region
                _
              $region78: #{neuro_net_forward.1} parent=51 // pred_fallthru
                _
            $region52: #{neuro_net_forward.1} parent=47 // pred_fallthru
              _
            // Predicated region
            $region53: #{neuro_net_forward.1} parent=47 // pred_check
              _
            $region54: #{neuro_net_forward.1} parent=47 // pred_check_branch
              %255 = sbr.rel target = $region56
            $region55: #{neuro_net_forward.1} parent=47 // pred_region
              loop: start=0, step=1, limit=1
              $region57: #{neuro_net_forward.1} parent=55 // loop_pre_header
                _
              $region58: #{neuro_net_forward.1} parent=55 // loop_header
                %s258 = sphi 0, %s262
                %p259 = scmp.ge.s32.totalorder %s258, 1
                %s263 = sphi %s249, %s249
                %s264 = sphi %s247, %s247
              $region59: #{neuro_net_forward.1} parent=55 // loop_header_branch
                %261 = sbr.rel (%p259) target = $region63
              $region60: #{neuro_net_forward.1} parent=55 // loop_body
                %v265 = vld [vmem:[%s263] sm:$0xff]
                %266 = vst [vmem:[%s264] sm:$0xff] %v265
                %v267 = vld [vmem:[%s263 + $0x10] sm:$0xff]
                %268 = vst [vmem:[%s264 + $0x8] sm:$0xff] %v267
                %v269 = vld [vmem:[%s263 + $0x20] sm:$0xff]
                %270 = vst [vmem:[%s264 + $0x10] sm:$0xff] %v269
                %v271 = vld [vmem:[%s263 + $0x30] sm:$0xff]
                %272 = vst [vmem:[%s264 + $0x18] sm:$0xff] %v271
                %v273 = vld [vmem:[%s263 + $0x40] sm:$0xff]
                %274 = vst [vmem:[%s264 + $0x20] sm:$0xff] %v273
                %v275 = vld [vmem:[%s263 + $0x50] sm:$0xff]
                %276 = vst [vmem:[%s264 + $0x28] sm:$0xff] %v275
                %v277 = vld [vmem:[%s263 + $0x60] sm:$0xff]
                %278 = vst [vmem:[%s264 + $0x30] sm:$0xff] %v277
                %v279 = vld [vmem:[%s263 + $0x70] sm:$0xff]
                %280 = vst [vmem:[%s264 + $0x38] sm:$0xff] %v279
                %v281 = vld [vmem:[%s263 + $0x80] sm:$0xff]
                %282 = vst [vmem:[%s264 + $0x40] sm:$0xff] %v281
                %v283 = vld [vmem:[%s263 + $0x90] sm:$0xff]
                %284 = vst [vmem:[%s264 + $0x48] sm:$0xff] %v283
                %v285 = vld [vmem:[%s263 + $0xa0] sm:$0xff]
                %286 = vst [vmem:[%s264 + $0x50] sm:$0xff] %v285
                %v287 = vld [vmem:[%s263 + $0xb0] sm:$0xff]
                %288 = vst [vmem:[%s264 + $0x58] sm:$0xff] %v287
                %v289 = vld [vmem:[%s263 + $0xc0] sm:$0xff]
                %290 = vst [vmem:[%s264 + $0x60] sm:$0xff] %v289
                %v291 = vld [vmem:[%s263 + $0xd0] sm:$0xff]
                %292 = vst [vmem:[%s264 + $0x68] sm:$0xff] %v291
                %v293 = vld [vmem:[%s263 + $0xe0] sm:$0xff]
                %294 = vst [vmem:[%s264 + $0x70] sm:$0xff] %v293
                %v295 = vld [vmem:[%s263 + $0xf0] sm:$0xff]
                %296 = vst [vmem:[%s264 + $0x78] sm:$0xff] %v295
              $region61: #{neuro_net_forward.1} parent=55 // loop_footer
                %s262 = sadd.s32 1, %s258
              $region62: #{neuro_net_forward.1} parent=55 // loop_footer_branch
                %257 = sbr.rel target = $region58
              $region63: #{neuro_net_forward.1} parent=55 // loop_exit
                _
            $region56: #{neuro_net_forward.1} parent=47 // pred_fallthru
              _
          $region48: #{neuro_net_forward.1} parent=43 // pred_fallthru
            _
          %341 = vnop
        $region44: #{neuro_net_forward.1} parent=31 // pred_fallthru
          _
      $region32: #{neuro_net_forward.1} parent=5 // pred_fallthru
        _
      %p342 = scmp.le.s32.totalorder 1, %s13
      %p343 = scmp.lt.s32.totalorder %s13, 3
      %p344 = pnand %p342, %p343
      %p345 = pneg %p344
      // Predicated region
      $region79: #{neuro_net_forward.1} parent=5 // pred_check
        _
      $region80: #{neuro_net_forward.1} parent=5 // pred_check_branch
        %347 = sbr.rel (%p344) target = $region82
      $region81: #{neuro_net_forward.1} parent=5 // pred_region
        %s348 = ssub.s32 %s13, 1
        %s349 = sand.u32 %s141, 1
        %s350 = sand.u32 %s141, 1
        %s351 = smul.addr %s350, 128
        %s352 = scalar_lea.vmem [#allocation4], %s351
        // Predicated region
        $region83: #{neuro_net_forward.1} parent=81 // pred_check
          %p353 = pneg %p154
        $region84: #{neuro_net_forward.1} parent=81 // pred_check_branch
          %355 = sbr.rel (%p353) target = $region86
        $region85: #{neuro_net_forward.1} parent=81 // pred_region
          _
        $region86: #{neuro_net_forward.1} parent=81 // pred_fallthru
          _
        %p356 = pneg %p34
        %p357 = pneg %p31
        %p358 = scmp.lt.s32.totalorder %s18, 1
        %s359 = scalar_select %p358, %s18, 1
        %s360 = smul.addr %s359, 8
        %s361 = scalar_lea.vmem %s1, %s360
        %p362 = pneg %p60
        %p363 = pneg %p57
        %p364 = pneg %p81
        %p365 = pneg %p78
        %p366 = pneg %p102
        %p367 = pneg %p99
        %p368 = scmp.lt.s32.totalorder %s18, 1
        %s369 = scalar_select %p368, %s18, 1
        %s370 = smul.addr %s369, 8
        %s371 = scalar_lea.vmem %s4, %s370
        %p372 = pneg %p128
        %p373 = pneg %p125
        %s374 = sand.u32 %s141, 1
        %s375 = sand.u32 %s141, 1
        %s376 = smul.addr %s375, 128
        %s377 = scalar_lea.vmem [#allocation4], %s376
        %p378 = pneg %p154
        %p379 = pneg %p151
        %p380 = pneg %p175
        %p381 = pneg %p172
        %p382 = pneg %p196
        %p383 = pneg %p193
        %p384 = scmp.lt.s32.totalorder %s18, 1
        %s385 = scalar_select %p384, %s18, 1
        %s386 = smul.addr %s385, 8
        %s387 = scalar_lea.vmem %s1, %s386
        %p388 = scmp.lt.s32.totalorder %s18, 1
        %s389 = scalar_select %p388, %s18, 1
        %s390 = smul.addr %s389, 8
        %s391 = scalar_lea.vmem %s4, %s390
        %p392 = scmp.eq.s32.totalorder %s18, 0
        // Predicated region
        $region87: #{neuro_net_forward.1} parent=81 // pred_check
          %p393 = pneg %p392
        $region88: #{neuro_net_forward.1} parent=81 // pred_check_branch
          %395 = sbr.rel (%p393) target = $region90
        $region89: #{neuro_net_forward.1} parent=81 // pred_region
          %vm396 = vcmask 7168
          %397 = vst.msk [vmem:[#allocation3] sm:$0xff] %vm396, 0.0
          %398 = vst.msk [vmem:[#allocation3 + $0x8] sm:$0xff] %vm396, 0.0
          %v399 = vld [vmem:[%s0] sm:$0xff]
          %vm400 = vcmp.ne.f32.partialorder %v399, 0.0
          %v401 = vsel %vm400, 1, 0
          %v402 = vcvt.s32.f32 %v401
          %v403 = vld [vmem:[%s2] sm:$0xff]
          %v405 = vcombine.high %v403, %v403
          %v407 = vunpack.c.l.s4 1966171168
          %v408 = vunpack.c.0.s8 %v407
          %v409 = vlaneseq
          %v410 = vshrl.u32 %v409, 7
          %v411 = vsub.s32 %v408, %v410
          %v412 = vrot.slane %v403, %v411
          %v414 = vunpack.c.l.s4 1966171168
          %v415 = vunpack.c.0.s8 %v414
          %v416 = vlaneseq
          %v417 = vshrl.u32 %v416, 7
          %v418 = vsub.s32 %v415, %v417
          %v419 = vrot.slane %v405, %v418
          %v420 = vcombine.high %v412, %v412
          %v421 = vcombine.high %v419, %v419
          %v423 = vunpack.c.l.s4 1966171168
          %v424 = vunpack.c.0.s8 %v423
          %v425 = vlaneseq
          %v426 = vshrl.u32 %v425, 7
          %v427 = vsub.s32 %v424, %v426
          %v428 = vrot.slane %v412, %v427
          %v430 = vunpack.c.l.s4 1966171168
          %v431 = vunpack.c.0.s8 %v430
          %v432 = vlaneseq
          %v433 = vshrl.u32 %v432, 7
          %v434 = vsub.s32 %v431, %v433
          %v435 = vrot.slane %v419, %v434
          %v437 = vunpack.c.l.s4 1966171168
          %v438 = vunpack.c.0.s8 %v437
          %v439 = vlaneseq
          %v440 = vshrl.u32 %v439, 7
          %v441 = vsub.s32 %v438, %v440
          %v442 = vrot.slane %v420, %v441
          %v444 = vunpack.c.l.s4 1966171168
          %v445 = vunpack.c.0.s8 %v444
          %v446 = vlaneseq
          %v447 = vshrl.u32 %v446, 7
          %v448 = vsub.s32 %v445, %v447
          %v449 = vrot.slane %v421, %v448
          %v450 = vcombine.high %v428, %v428
          %v451 = vcombine.high %v435, %v435
          %v452 = vcombine.high %v442, %v442
          %v453 = vcombine.high %v449, %v449
          %v454 = vld [vmem:[%s3] sm:$0xf]
          %v455 = vlaneseq
          %v456 = vshrl.u32 %v455, 7
          %v457 = vsub.s32 0, %v456
          %v458 = vrot.slane %v428, %v457
          %v459 = vlaneseq
          %v460 = vshrl.u32 %v459, 7
          %v461 = vsub.s32 0, %v460
          %v462 = vrot.slane %v442, %v461
          %v463 = vlaneseq
          %v464 = vshrl.u32 %v463, 7
          %v465 = vsub.s32 0, %v464
          %v466 = vrot.slane %v450, %v465
          %v467 = vlaneseq
          %v468 = vshrl.u32 %v467, 7
          %v469 = vsub.s32 0, %v468
          %v470 = vrot.slane %v452, %v469
          %v471 = vlaneseq
          %v472 = vshrl.u32 %v471, 7
          %v473 = vsub.s32 0, %v472
          %v474 = vrot.slane %v435, %v473
          %v475 = vlaneseq
          %v476 = vshrl.u32 %v475, 7
          %v477 = vsub.s32 0, %v476
          %v478 = vrot.slane %v449, %v477
          %v479 = vlaneseq
          %v480 = vshrl.u32 %v479, 7
          %v481 = vsub.s32 0, %v480
          %v482 = vrot.slane %v451, %v481
          %v483 = vlaneseq
          %v484 = vshrl.u32 %v483, 7
          %v485 = vsub.s32 0, %v484
          %v486 = vrot.slane %v453, %v485
          %v495 = vadd.f32 %v458, %v454
          %v496 = vadd.f32 %v462, %v454
          %v497 = vadd.f32 %v466, %v454
          %v498 = vadd.f32 %v470, %v454
          %v499 = vadd.f32 %v474, %v454
          %v500 = vadd.f32 %v478, %v454
          %v501 = vadd.f32 %v482, %v454
          %v502 = vadd.f32 %v486, %v454
          %v504 = vcombine.high %v402, %v402
          %v506 = vunpack.c.l.s4 1966171168
          %v507 = vunpack.c.0.s8 %v506
          %v508 = vlaneseq
          %v509 = vshrl.u32 %v508, 7
          %v510 = vsub.s32 %v507, %v509
          %v511 = vrot.slane %v402, %v510
          %v513 = vunpack.c.l.s4 1966171168
          %v514 = vunpack.c.0.s8 %v513
          %v515 = vlaneseq
          %v516 = vshrl.u32 %v515, 7
          %v517 = vsub.s32 %v514, %v516
          %v518 = vrot.slane %v504, %v517
          %v519 = vcombine.high %v511, %v511
          %v520 = vcombine.high %v518, %v518
          %v522 = vunpack.c.l.s4 1966171168
          %v523 = vunpack.c.0.s8 %v522
          %v524 = vlaneseq
          %v525 = vshrl.u32 %v524, 7
          %v526 = vsub.s32 %v523, %v525
          %v527 = vrot.slane %v511, %v526
          %v529 = vunpack.c.l.s4 1966171168
          %v530 = vunpack.c.0.s8 %v529
          %v531 = vlaneseq
          %v532 = vshrl.u32 %v531, 7
          %v533 = vsub.s32 %v530, %v532
          %v534 = vrot.slane %v518, %v533
          %v536 = vunpack.c.l.s4 1966171168
          %v537 = vunpack.c.0.s8 %v536
          %v538 = vlaneseq
          %v539 = vshrl.u32 %v538, 7
          %v540 = vsub.s32 %v537, %v539
          %v541 = vrot.slane %v519, %v540
          %v543 = vunpack.c.l.s4 1966171168
          %v544 = vunpack.c.0.s8 %v543
          %v545 = vlaneseq
          %v546 = vshrl.u32 %v545, 7
          %v547 = vsub.s32 %v544, %v546
          %v548 = vrot.slane %v520, %v547
          %v549 = vcombine.high %v527, %v527
          %v550 = vcombine.high %v534, %v534
          %v551 = vcombine.high %v541, %v541
          %v552 = vcombine.high %v548, %v548
          %v553 = vlaneseq
          %v554 = vshrl.u32 %v553, 7
          %v555 = vsub.s32 0, %v554
          %v556 = vrot.slane %v527, %v555
          %v557 = vlaneseq
          %v558 = vshrl.u32 %v557, 7
          %v559 = vsub.s32 0, %v558
          %v560 = vrot.slane %v541, %v559
          %v561 = vlaneseq
          %v562 = vshrl.u32 %v561, 7
          %v563 = vsub.s32 0, %v562
          %v564 = vrot.slane %v549, %v563
          %v565 = vlaneseq
          %v566 = vshrl.u32 %v565, 7
          %v567 = vsub.s32 0, %v566
          %v568 = vrot.slane %v551, %v567
          %v569 = vlaneseq
          %v570 = vshrl.u32 %v569, 7
          %v571 = vsub.s32 0, %v570
          %v572 = vrot.slane %v534, %v571
          %v573 = vlaneseq
          %v574 = vshrl.u32 %v573, 7
          %v575 = vsub.s32 0, %v574
          %v576 = vrot.slane %v548, %v575
          %v577 = vlaneseq
          %v578 = vshrl.u32 %v577, 7
          %v579 = vsub.s32 0, %v578
          %v580 = vrot.slane %v550, %v579
          %v581 = vlaneseq
          %v582 = vshrl.u32 %v581, 7
          %v583 = vsub.s32 0, %v582
          %v584 = vrot.slane %v552, %v583
          %585 = vset.pattern.permute.xlu0 0
          %586 = vperm.xlu0 %585, %v556
          %v587 = vpop.permute.xlu0 %586
          %589 = vset.pattern.permute.xlu0 0
          %590 = vperm.xlu0 %589, %v560
          %v591 = vpop.permute.xlu0 %590
          %593 = vset.pattern.permute.xlu0 0
          %594 = vperm.xlu0 %593, %v564
          %v595 = vpop.permute.xlu0 %594
          %597 = vset.pattern.permute.xlu0 0
          %598 = vperm.xlu0 %597, %v568
          %v599 = vpop.permute.xlu0 %598
          %601 = vset.pattern.permute.xlu0 0
          %602 = vperm.xlu0 %601, %v572
          %v603 = vpop.permute.xlu0 %602
          %605 = vset.pattern.permute.xlu0 0
          %606 = vperm.xlu0 %605, %v576
          %v607 = vpop.permute.xlu0 %606
          %609 = vset.pattern.permute.xlu0 0
          %610 = vperm.xlu0 %609, %v580
          %v611 = vpop.permute.xlu0 %610
          %613 = vset.pattern.permute.xlu0 0
          %614 = vperm.xlu0 %613, %v584
          %v615 = vpop.permute.xlu0 %614
          %v617 = vmul.f32 %v495, %v587
          %v618 = vmul.f32 %v496, %v591
          %v619 = vmul.f32 %v497, %v595
          %v620 = vmul.f32 %v498, %v599
          %v621 = vmul.f32 %v499, %v603
          %v622 = vmul.f32 %v500, %v607
          %v623 = vmul.f32 %v501, %v611
          %v624 = vmul.f32 %v502, %v615
          %v625 = vmul.f32 %v617, %v617
          %v626 = vmul.f32 %v618, %v618
          %v627 = vmul.f32 %v619, %v619
          %v628 = vmul.f32 %v620, %v620
          %v629 = vmul.f32 %v621, %v621
          %v630 = vmul.f32 %v622, %v622
          %v631 = vmul.f32 %v623, %v623
          %v632 = vmul.f32 %v624, %v624
          %v641 = vcombine.low %v625, %v626
          %v642 = vcombine.low %v627, %v628
          %v643 = vcombine.low %v629, %v630
          %v644 = vcombine.low %v631, %v632
          %vm649 = vcmask 261120
          %v650 = vsel %vm649, %v641, 0.0
          %651 = vadd.xlane.f32.xlu0 %v650
          %v652 = vpop.xlane.xlu0 %651
          %v653 = vsel %vm649, %v642, 0.0
          %654 = vadd.xlane.f32.xlu0 %v653
          %v655 = vpop.xlane.xlu0 %654
          %v656 = vsel %vm649, %v643, 0.0
          %657 = vadd.xlane.f32.xlu0 %v656
          %v658 = vpop.xlane.xlu0 %657
          %v659 = vsel %vm649, %v644, 0.0
          %660 = vadd.xlane.f32.xlu0 %v659
          %v661 = vpop.xlane.xlu0 %660
          %v662 = vmax.f32 %v652, 1e-12
          %v663 = vmax.f32 %v655, 1e-12
          %v664 = vmax.f32 %v658, 1e-12
          %v665 = vmax.f32 %v661, 1e-12
          %v666 = vrsqrt.pop %v662
          %v667 = vrsqrt.pop %v663
          %v668 = vrsqrt.pop %v664
          %v669 = vrsqrt.pop %v665
          %v675 = vunpack.c.l.s4 839922192
          %v676 = vunpack.c.0.s8 %v675
          %v677 = vlaneseq
          %v678 = vshrl.u32 %v677, 7
          %v679 = vsub.s32 %v676, %v678
          %v680 = vrot.slane %v666, %v679
          %v682 = vunpack.c.l.s4 1985246804
          %v683 = vunpack.c.0.s8 %v682
          %v684 = vlaneseq
          %v685 = vshrl.u32 %v684, 7
          %v686 = vsub.s32 %v683, %v685
          %v687 = vrot.slane %v666, %v686
          %v689 = vunpack.c.l.s4 839922192
          %v690 = vunpack.c.0.s8 %v689
          %v691 = vlaneseq
          %v692 = vshrl.u32 %v691, 7
          %v693 = vsub.s32 %v690, %v692
          %v694 = vrot.slane %v667, %v693
          %v696 = vunpack.c.l.s4 1985246804
          %v697 = vunpack.c.0.s8 %v696
          %v698 = vlaneseq
          %v699 = vshrl.u32 %v698, 7
          %v700 = vsub.s32 %v697, %v699
          %v701 = vrot.slane %v667, %v700
          %v703 = vunpack.c.l.s4 839922192
          %v704 = vunpack.c.0.s8 %v703
          %v705 = vlaneseq
          %v706 = vshrl.u32 %v705, 7
          %v707 = vsub.s32 %v704, %v706
          %v708 = vrot.slane %v668, %v707
          %v710 = vunpack.c.l.s4 1985246804
          %v711 = vunpack.c.0.s8 %v710
          %v712 = vlaneseq
          %v713 = vshrl.u32 %v712, 7
          %v714 = vsub.s32 %v711, %v713
          %v715 = vrot.slane %v668, %v714
          %v717 = vunpack.c.l.s4 839922192
          %v718 = vunpack.c.0.s8 %v717
          %v719 = vlaneseq
          %v720 = vshrl.u32 %v719, 7
          %v721 = vsub.s32 %v718, %v720
          %v722 = vrot.slane %v669, %v721
          %v724 = vunpack.c.l.s4 1985246804
          %v725 = vunpack.c.0.s8 %v724
          %v726 = vlaneseq
          %v727 = vshrl.u32 %v726, 7
          %v728 = vsub.s32 %v725, %v727
          %v729 = vrot.slane %v669, %v728
          %v738 = vmul.f32 %v617, %v680
          %v739 = vmul.f32 %v618, %v687
          %v740 = vmul.f32 %v619, %v694
          %v741 = vmul.f32 %v620, %v701
          %v742 = vmul.f32 %v621, %v708
          %v743 = vmul.f32 %v622, %v715
          %v744 = vmul.f32 %v623, %v722
          %v745 = vmul.f32 %v624, %v729
          %v754 = vcombine.low %v738, %v739
          %v755 = vcombine.low %v740, %v741
          %v756 = vcombine.low %v742, %v743
          %v757 = vcombine.low %v744, %v745
          %762 = vst.msk [vmem:[#allocation2] sm:$0xff] %vm649, %v754
          %763 = vst.msk [vmem:[#allocation2 + $0x8] sm:$0xff] %vm649, %v755
          %764 = vst.msk [vmem:[#allocation2 + $0x10] sm:$0xff] %vm649, %v756
          %765 = vst.msk [vmem:[#allocation2 + $0x18] sm:$0xff] %vm649, %v757
        $region90: #{neuro_net_forward.1} parent=81 // pred_fallthru
          _
        %v766 = vld [vmem:[%s391] sm:$0xff]
        %v767 = vmul.f32 %v766, %v766
        %vm768 = vcmask 261120
        %v769 = vsel %vm768, %v767, 0.0
        %770 = vadd.xlane.f32.xlu0 %v769
        %v771 = vpop.xlane.xlu0 %770
        %v772 = vmax.f32 %v771, 1e-12
        %v773 = vrsqrt.pop %v772
        %v774 = vmul.f32 %v766, %v773
        %v775 = vld [vmem:[#allocation2] sm:$0xff]
        %v776 = vld [vmem:[#allocation2 + $0x8] sm:$0xff]
        %v777 = vld [vmem:[#allocation2 + $0x10] sm:$0xff]
        %v778 = vld [vmem:[#allocation2 + $0x18] sm:$0xff]
        %v780 = vsel %vm768, %v774, 0
        %v783 = vsel %vm768, %v775, 0
        %v786 = vsel %vm768, %v776, 0
        %v789 = vsel %vm768, %v777, 0
        %v792 = vsel %vm768, %v778, 0
        %794 = vmatprep.subr.mxu0 0.0
        %795 = vmatpush1.xpose.msra.mxu0 %v783
        %796 = vmatprep.subr.mxu0 0.0
        %797 = vmatpush1.xpose.msra.mxu0 %v786
        %798 = vmatprep.subr.mxu0 0.0
        %799 = vmatpush1.xpose.msra.mxu0 %v789
        %800 = vmatprep.subr.mxu0 0.0
        %801 = vmatpush1.xpose.msra.mxu0 %v792
        %802 = vmatprep.subr.mxu0 0.0
        %803 = vmatpush1.xpose.msra.mxu0 0.0
        %804 = vmatprep.subr.mxu0 0.0
        %805 = vmatpush1.xpose.msra.mxu0 0.0
        %806 = vmatprep.subr.mxu0 0.0
        %807 = vmatpush1.xpose.msra.mxu0 0.0
        %808 = vmatprep.subr.mxu0 0.0
        %809 = vmatpush1.xpose.msra.mxu0 0.0
        %810 = vmatprep.subr.mxu0 0.0
        %811 = vmatpush1.xpose.msra.mxu0 0.0
        %812 = vmatprep.subr.mxu0 0.0
        %813 = vmatpush1.xpose.msra.mxu0 0.0
        %814 = vmatprep.subr.mxu0 0.0
        %815 = vmatpush1.xpose.msra.mxu0 0.0
        %816 = vmatprep.subr.mxu0 0.0
        %817 = vmatpush1.xpose.msra.mxu0 0.0
        %818 = vmatprep.subr.mxu0 0.0
        %819 = vmatpush1.xpose.msra.mxu0 0.0
        %820 = vmatprep.subr.mxu0 0.0
        %821 = vmatpush1.xpose.msra.mxu0 0.0
        %822 = vmatprep.subr.mxu0 0.0
        %823 = vmatpush1.xpose.msra.mxu0 0.0
        %824 = vmatprep.subr.mxu0 0.0
        %825 = vmatpush1.xpose.msra.mxu0 0.0
        %826 = vmatprep.subr.mxu0 0.0
        %827 = vmatpush1.xpose.msra.mxu0 0.0
        %828 = vmatprep.subr.mxu0 0.0
        %829 = vmatpush1.xpose.msra.mxu0 0.0
        %830 = vmatprep.subr.mxu0 0.0
        %831 = vmatpush1.xpose.msra.mxu0 0.0
        %832 = vmatprep.subr.mxu0 0.0
        %833 = vmatpush1.xpose.msra.mxu0 0.0
        %834 = vmatprep.subr.mxu0 0.0
        %835 = vmatpush1.xpose.msra.mxu0 0.0
        %836 = vmatprep.subr.mxu0 0.0
        %837 = vmatpush1.xpose.msra.mxu0 0.0
        %838 = vmatprep.subr.mxu0 0.0
        %839 = vmatpush1.xpose.msra.mxu0 0.0
        %840 = vmatprep.subr.mxu0 0.0
        %841 = vmatpush1.xpose.msra.mxu0 0.0
        %842 = vmatprep.subr.mxu0 0.0
        %843 = vmatpush1.xpose.msra.mxu0 0.0
        %844 = vmatprep.subr.mxu0 0.0
        %845 = vmatpush1.xpose.msra.mxu0 0.0
        %846 = vmatprep.subr.mxu0 0.0
        %847 = vmatpush1.xpose.msra.mxu0 0.0
        %848 = vmatprep.subr.mxu0 0.0
        %849 = vmatpush1.xpose.msra.mxu0 0.0
        %850 = vmatprep.subr.mxu0 0.0
        %851 = vmatpush1.xpose.msra.mxu0 0.0
        %852 = vmatprep.subr.mxu0 0.0
        %853 = vmatpush1.xpose.msra.mxu0 0.0
        %854 = vmatprep.subr.mxu0 0.0
        %855 = vmatpush1.xpose.msra.mxu0 0.0
        %856 = vmatprep.subr.mxu0 0.0
        %857 = vmatpush1.xpose.msra.mxu0 0.0
        %858 = vmatprep.mubr.f32.mxu0 0.0
        %859 = vmatmul.mubr.f32.gmra.mrb[0].mxu0 %v780
        %v860 = vpop.f32.mrb[0].mxu0
        %v861 = vadd.f32 0.0, %v860
        %v862 = vpop.f32.mrb[0].mxu0
        %863 = vdwg.mxu0
        %v864 = vld [vmem:[%s387] sm:$0xff]
        %866 = vrot.lane.b32.xlu0 %v861, 16
        %v867 = vpop.permute.xlu0 %866
        %vm869 = vcmask 130048
        %v870 = vsel %vm869, %v864, %v867
        %v871 = vld [vmem:[%s352] sm:$0xff]
        %v872 = vld [vmem:[%s352 + $0x8] sm:$0xff]
        %v873 = vld [vmem:[%s352 + $0x10] sm:$0xff]
        %v874 = vld [vmem:[%s352 + $0x18] sm:$0xff]
        %v875 = vld [vmem:[%s352 + $0x20] sm:$0xff]
        %v876 = vld [vmem:[%s352 + $0x28] sm:$0xff]
        %v877 = vld [vmem:[%s352 + $0x30] sm:$0xff]
        %v878 = vld [vmem:[%s352 + $0x38] sm:$0xff]
        %v879 = vld [vmem:[%s352 + $0x40] sm:$0xff]
        %v880 = vld [vmem:[%s352 + $0x48] sm:$0xff]
        %v881 = vld [vmem:[%s352 + $0x50] sm:$0xff]
        %v882 = vld [vmem:[%s352 + $0x58] sm:$0xff]
        %v883 = vld [vmem:[%s352 + $0x60] sm:$0xff]
        %v884 = vld [vmem:[%s352 + $0x68] sm:$0xff]
        %v885 = vld [vmem:[%s352 + $0x70] sm:$0xff]
        %v886 = vld [vmem:[%s352 + $0x78] sm:$0xff]
        %v887 = vmul.f32 %v871, %v870
        %v888 = vmul.f32 %v872, %v870
        %v889 = vmul.f32 %v873, %v870
        %v890 = vmul.f32 %v874, %v870
        %v891 = vmul.f32 %v875, %v870
        %v892 = vmul.f32 %v876, %v870
        %v893 = vmul.f32 %v877, %v870
        %v894 = vmul.f32 %v878, %v870
        %v895 = vmul.f32 %v879, %v870
        %v896 = vmul.f32 %v880, %v870
        %v897 = vmul.f32 %v881, %v870
        %v898 = vmul.f32 %v882, %v870
        %v899 = vmul.f32 %v883, %v870
        %v900 = vmul.f32 %v884, %v870
        %v901 = vmul.f32 %v885, %v870
        %v902 = vmul.f32 %v886, %v870
        %vm903 = vcmask 392192
        %v904 = vsel %vm903, %v887, 0.0
        %905 = vadd.xlane.f32.xlu0 %v904
        %v906 = vpop.xlane.xlu0 %905
        %v907 = vsel %vm903, %v888, 0.0
        %908 = vadd.xlane.f32.xlu0 %v907
        %v909 = vpop.xlane.xlu0 %908
        %v910 = vsel %vm903, %v889, 0.0
        %911 = vadd.xlane.f32.xlu0 %v910
        %v912 = vpop.xlane.xlu0 %911
        %v913 = vsel %vm903, %v890, 0.0
        %914 = vadd.xlane.f32.xlu0 %v913
        %v915 = vpop.xlane.xlu0 %914
        %v916 = vsel %vm903, %v891, 0.0
        %917 = vadd.xlane.f32.xlu0 %v916
        %v918 = vpop.xlane.xlu0 %917
        %v919 = vsel %vm903, %v892, 0.0
        %920 = vadd.xlane.f32.xlu0 %v919
        %v921 = vpop.xlane.xlu0 %920
        %v922 = vsel %vm903, %v893, 0.0
        %923 = vadd.xlane.f32.xlu0 %v922
        %v924 = vpop.xlane.xlu0 %923
        %v925 = vsel %vm903, %v894, 0.0
        %926 = vadd.xlane.f32.xlu0 %v925
        %v927 = vpop.xlane.xlu0 %926
        %v928 = vsel %vm903, %v895, 0.0
        %929 = vadd.xlane.f32.xlu0 %v928
        %v930 = vpop.xlane.xlu0 %929
        %v931 = vsel %vm903, %v896, 0.0
        %932 = vadd.xlane.f32.xlu0 %v931
        %v933 = vpop.xlane.xlu0 %932
        %v934 = vsel %vm903, %v897, 0.0
        %935 = vadd.xlane.f32.xlu0 %v934
        %v936 = vpop.xlane.xlu0 %935
        %v937 = vsel %vm903, %v898, 0.0
        %938 = vadd.xlane.f32.xlu0 %v937
        %v939 = vpop.xlane.xlu0 %938
        %v940 = vsel %vm903, %v899, 0.0
        %941 = vadd.xlane.f32.xlu0 %v940
        %v942 = vpop.xlane.xlu0 %941
        %v943 = vsel %vm903, %v900, 0.0
        %944 = vadd.xlane.f32.xlu0 %v943
        %v945 = vpop.xlane.xlu0 %944
        %v946 = vsel %vm903, %v901, 0.0
        %947 = vadd.xlane.f32.xlu0 %v946
        %v948 = vpop.xlane.xlu0 %947
        %v949 = vsel %vm903, %v902, 0.0
        %950 = vadd.xlane.f32.xlu0 %v949
        %v951 = vpop.xlane.xlu0 %950
        %v952 = vld [vmem:[#allocation3] sm:$0xff]
        %v953 = vld [vmem:[#allocation3 + $0x8] sm:$0xff]
        %v970 = vlaneseq
        %v971 = vand.u32 %v970, 127
        %v972 = vlaneseq
        %v973 = vshrl.u32 %v972, 7
        %v974 = vsub.s32 %v971, %v973
        %v975 = vrot.slane %v906, %v974
        %v976 = vlaneseq
        %v977 = vshrl.u32 %v976, 7
        %v978 = vsub.s32 %v971, %v977
        %v979 = vrot.slane %v909, %v978
        %v980 = vlaneseq
        %v981 = vshrl.u32 %v980, 7
        %v982 = vsub.s32 %v971, %v981
        %v983 = vrot.slane %v912, %v982
        %v984 = vlaneseq
        %v985 = vshrl.u32 %v984, 7
        %v986 = vsub.s32 %v971, %v985
        %v987 = vrot.slane %v915, %v986
        %v988 = vlaneseq
        %v989 = vshrl.u32 %v988, 7
        %v990 = vsub.s32 %v971, %v989
        %v991 = vrot.slane %v918, %v990
        %v992 = vlaneseq
        %v993 = vshrl.u32 %v992, 7
        %v994 = vsub.s32 %v971, %v993
        %v995 = vrot.slane %v921, %v994
        %v996 = vlaneseq
        %v997 = vshrl.u32 %v996, 7
        %v998 = vsub.s32 %v971, %v997
        %v999 = vrot.slane %v924, %v998
        %v1000 = vlaneseq
        %v1001 = vshrl.u32 %v1000, 7
        %v1002 = vsub.s32 %v971, %v1001
        %v1003 = vrot.slane %v927, %v1002
        %v1004 = vlaneseq
        %v1005 = vshrl.u32 %v1004, 7
        %v1006 = vsub.s32 %v971, %v1005
        %v1007 = vrot.slane %v930, %v1006
        %v1008 = vlaneseq
        %v1009 = vshrl.u32 %v1008, 7
        %v1010 = vsub.s32 %v971, %v1009
        %v1011 = vrot.slane %v933, %v1010
        %v1012 = vlaneseq
        %v1013 = vshrl.u32 %v1012, 7
        %v1014 = vsub.s32 %v971, %v1013
        %v1015 = vrot.slane %v936, %v1014
        %v1016 = vlaneseq
        %v1017 = vshrl.u32 %v1016, 7
        %v1018 = vsub.s32 %v971, %v1017
        %v1019 = vrot.slane %v939, %v1018
        %v1020 = vlaneseq
        %v1021 = vshrl.u32 %v1020, 7
        %v1022 = vsub.s32 %v971, %v1021
        %v1023 = vrot.slane %v942, %v1022
        %v1024 = vlaneseq
        %v1025 = vshrl.u32 %v1024, 7
        %v1026 = vsub.s32 %v971, %v1025
        %v1027 = vrot.slane %v945, %v1026
        %v1028 = vlaneseq
        %v1029 = vshrl.u32 %v1028, 7
        %v1030 = vsub.s32 %v971, %v1029
        %v1031 = vrot.slane %v948, %v1030
        %v1032 = vlaneseq
        %v1033 = vshrl.u32 %v1032, 7
        %v1034 = vsub.s32 %v971, %v1033
        %v1035 = vrot.slane %v951, %v1034
        %vm1036 = vcmask 1041409
        %v1037 = vsel %vm1036, %v979, %v975
        %vm1038 = vcmask 1042434
        %v1039 = vsel %vm1038, %v983, %v1037
        %vm1040 = vcmask 1043459
        %v1041 = vsel %vm1040, %v987, %v1039
        %vm1042 = vcmask 1044484
        %v1043 = vsel %vm1042, %v991, %v1041
        %vm1044 = vcmask 1045509
        %v1045 = vsel %vm1044, %v995, %v1043
        %vm1046 = vcmask 1046534
        %v1047 = vsel %vm1046, %v999, %v1045
        %vm1048 = vcmask 1047559
        %v1049 = vsel %vm1048, %v1003, %v1047
        %v1050 = vsel %vm1036, %v1011, %v1007
        %v1051 = vsel %vm1038, %v1015, %v1050
        %v1052 = vsel %vm1040, %v1019, %v1051
        %v1053 = vsel %vm1042, %v1023, %v1052
        %v1054 = vsel %vm1044, %v1027, %v1053
        %v1055 = vsel %vm1046, %v1031, %v1054
        %v1056 = vsel %vm1048, %v1035, %v1055
        %vm1059 = vcmask 64512
        %v1060 = vsel %vm1059, %v1049, 0.0
        %1061 = vadd.xlane.f32.xlu0 %v1060
        %v1062 = vpop.xlane.xlu0 %1061
        %v1063 = vsel %vm1059, %v1056, 0.0
        %1064 = vadd.xlane.f32.xlu0 %v1063
        %v1065 = vpop.xlane.xlu0 %1064
        %v1066 = vadd.f32 %v952, %v1062
        %v1067 = vadd.f32 %v953, %v1065
        %vm1068 = vcmask 7168
        %1069 = vst.msk [vmem:[#allocation3] sm:$0xff] %vm1068, %v1066
        %1070 = vst.msk [vmem:[#allocation3 + $0x8] sm:$0xff] %vm1068, %v1067
        %p1071 = scmp.eq.s32.totalorder %s18, 1
        // Predicated region
        $region91: #{neuro_net_forward.1} parent=81 // pred_check
          %p1072 = pneg %p1071
        $region92: #{neuro_net_forward.1} parent=81 // pred_check_branch
          %1074 = sbr.rel (%p1072) target = $region94
        $region93: #{neuro_net_forward.1} parent=81 // pred_region
          %v1075 = vld [vmem:[#allocation3] sm:$0xff]
          %v1076 = vld [vmem:[#allocation3 + $0x8] sm:$0xff]
          %v1077 = vld [vmem:[%s6] sm:$0xff]
          %v1078 = vld [vmem:[%s6 + $0x8] sm:$0xff]
          %v1079 = vadd.f32 %v1075, %v1077
          %v1080 = vadd.f32 %v1076, %v1078
          %v1081 = vsub.f32 0.0, %v1079
          %v1082 = vsub.f32 0.0, %v1080
          %v1083 = vmul.f32 %v1081, 1.442695
          %v1084 = vpow.pop %v1083
          %v1085 = vmul.f32 %v1082, 1.442695
          %v1086 = vpow.pop %v1085
          %v1087 = vadd.f32 %v1084, 1.0
          %v1088 = vadd.f32 %v1086, 1.0
          %v1089 = vrcp.pop %v1087
          %v1090 = vmul.f32 1.0, %v1089
          %v1091 = vrcp.pop %v1088
          %v1092 = vmul.f32 1.0, %v1091
          %1093 = vst.msk [vmem:[%s7] sm:$0xff] %vm1068, %v1090
          %1094 = vst.msk [vmem:[%s7 + $0x8] sm:$0xff] %vm1068, %v1092
        $region94: #{neuro_net_forward.1} parent=81 // pred_fallthru
          _
        // Predicated region
        $region95: #{neuro_net_forward.1} parent=81 // pred_check
          %p1095 = pneg %p193
        $region96: #{neuro_net_forward.1} parent=81 // pred_check_branch
          %1097 = sbr.rel (%p1095) target = $region98
        $region97: #{neuro_net_forward.1} parent=81 // pred_region
          _
        $region98: #{neuro_net_forward.1} parent=81 // pred_fallthru
          _
        // Predicated region
        $region99: #{neuro_net_forward.1} parent=81 // pred_check
          %p1098 = pneg %p193
        $region100: #{neuro_net_forward.1} parent=81 // pred_check_branch
          %1100 = sbr.rel (%p1098) target = $region102
        $region101: #{neuro_net_forward.1} parent=81 // pred_region
          _
        $region102: #{neuro_net_forward.1} parent=81 // pred_fallthru
          _
      $region82: #{neuro_net_forward.1} parent=5 // pred_fallthru
        _
      %p1101 = scmp.le.s32.totalorder 2, %s13
      // Predicated region
      $region103: #{neuro_net_forward.1} parent=5 // pred_check
        %p1102 = pneg %p1101
      $region104: #{neuro_net_forward.1} parent=5 // pred_check_branch
        %1104 = sbr.rel (%p1102) target = $region106
      $region105: #{neuro_net_forward.1} parent=5 // pred_region
        %s1105 = ssub.s32 %s13, 2
      $region106: #{neuro_net_forward.1} parent=5 // pred_fallthru
        _
    $region6: #{neuro_net_forward.1} parent=1 // loop_footer
      %s17 = sadd.s32 1, %s13
    $region7: #{neuro_net_forward.1} parent=1 // loop_footer_branch
      %12 = sbr.rel target = $region3
    $region8: #{neuro_net_forward.1} parent=1 // loop_exit
      _

</llo_original>
